<compile_context>
chip_gen: v5e
topology: v5e:2x2
jax: 0.10.0
libtpu: 0.0.40
codegen_flags: <defaults>
</compile_context>

<pallas_src>
import functools

import jax
import jax.numpy as jnp
from jax.experimental import pallas as pl
from jax.experimental.pallas import tpu as pltpu

_LANE = 128
_SUBLANE = 8
_HIDDEN1 = 256   # 200 padded up to a lane multiple
_HIDDEN2 = 128   # 10  padded up to a lane multiple


def _round_up(x, m):
    return ((x + m - 1) // m) * m


def _actor_kernel(x_ref, w1_ref, w2_ref, w3_ref, w4_ref, b_ref, out_ref,
                  *, max_action):
    """One batch tile of the 4-layer MLP.  Weights/biases are VMEM-resident."""
    # Packed bias layout: [b1(256) | b2(256) | b3(128) | b4(A_pad)], all f32.
    b1 = b_ref[:, 0:_HIDDEN1]
    b2 = b_ref[:, _HIDDEN1:2 * _HIDDEN1]
    b3 = b_ref[:, 2 * _HIDDEN1:2 * _HIDDEN1 + _HIDDEN2]
    b4 = b_ref[:, 2 * _HIDDEN1 + _HIDDEN2:]

    # Layer 1: [bm, S](f32 -> bf16) @ [S, 256](bf16) -> f32 acc; bias+relu f32.
    x = x_ref[...].astype(jnp.bfloat16)
    a = jnp.dot(x, w1_ref[...], preferred_element_type=jnp.float32)
    a = jnp.maximum(a + b1, 0.0)
    # Layer 2: [bm, 256] @ [256, 256]
    a = jnp.dot(a.astype(jnp.bfloat16), w2_ref[...],
                preferred_element_type=jnp.float32)
    a = jnp.maximum(a + b2, 0.0)
    # Layer 3: [bm, 256] @ [256, 128]
    a = jnp.dot(a.astype(jnp.bfloat16), w3_ref[...],
                preferred_element_type=jnp.float32)
    a = jnp.maximum(a + b3, 0.0)
    # Layer 4: [bm, 128] @ [128, A_pad]; max_action * tanh epilogue in f32.
    a = jnp.dot(a.astype(jnp.bfloat16), w4_ref[...],
                preferred_element_type=jnp.float32)
    out_ref[...] = (max_action * jnp.tanh(a + b4)).astype(out_ref.dtype)


def _choose_batch_tile(batch, block_batch):
    """Pick (bm, B_pad).

    Large tiles amortize the ~0.35 us per-grid-step pipeline overhead.  For
    batches that would otherwise be a single grid step, split in two when each
    half still carries >=512 rows so v7x megacore gets work on both cores.
    """
    b8 = _round_up(max(batch, 1), _SUBLANE)
    if b8 <= block_batch:
        if b8 >= 1024:
            bm = _round_up((b8 + 1) // 2, _SUBLANE)
            return bm, 2 * bm
        return b8, b8
    return block_batch, _round_up(batch, block_batch)


def actor_forward(state, padded_params, max_action, action_dim, *,
                  block_batch=1024):
    """state: [B, state_dim] f32.  padded_params: output of pad_actor_params."""
    B, S = state.shape
    A_pad = padded_params["w4"].shape[1]
    bias_width = padded_params["b"].shape[1]
    bm, B_pad = _choose_batch_tile(B, block_batch)

    # Pad the batch axis only when it is not already a tile multiple; the
    # feature axis stays at its real width (no inflated input DMA, no extra
    # host-side pass over the state).
    if B_pad != B:
        x = jnp.zeros((B_pad, S), state.dtype).at[:B].set(state)
    else:
        x = state

    grid = (B_pad // bm,)
    resident = dict(pipeline_mode=pl.Buffered(1))   # fetch once, single buffer

    in_specs = [
        pl.BlockSpec((bm, S), lambda i: (i, 0)),                           # state
        pl.BlockSpec((S, _HIDDEN1), lambda i: (0, 0), **resident),         # w1
        pl.BlockSpec((_HIDDEN1, _HIDDEN1), lambda i: (0, 0), **resident),  # w2
        pl.BlockSpec((_HIDDEN1, _HIDDEN2), lambda i: (0, 0), **resident),  # w3
        pl.BlockSpec((_HIDDEN2, A_pad), lambda i: (0, 0), **resident),     # w4
        pl.BlockSpec((1, bias_width), lambda i: (0, 0), **resident),       # biases
    ]
    out_specs = pl.BlockSpec((bm, A_pad), lambda i: (i, 0))

    mm_params = (S * _HIDDEN1 + _HIDDEN1 * _HIDDEN1
                 + _HIDDEN1 * _HIDDEN2 + _HIDDEN2 * A_pad)
    cost = pl.CostEstimate(
        flops=2 * B_pad * mm_params,
        transcendentals=B_pad * A_pad,
        bytes_accessed=(B_pad * S * 4            # state in (f32)
                        + B_pad * A_pad * 2      # actions out (bf16)
                        + 2 * mm_params          # bf16 weights
                        + 4 * bias_width),       # f32 biases
    )

    out = pl.pallas_call(
        functools.partial(_actor_kernel, max_action=float(max_action)),
        out_shape=jax.ShapeDtypeStruct((B_pad, A_pad), jnp.bfloat16),
        grid=grid,
        in_specs=in_specs,
        out_specs=out_specs,
        compiler_params=pltpu.CompilerParams(
            dimension_semantics=("parallel",),
            # ~5 MiB working set at bm=1024; 32 MiB leaves headroom for larger
            # block_batch and stays within v7x's 32 MiB scoped default.
            vmem_limit_bytes=32 * 1024 * 1024),
        cost_estimate=cost,
    )(
        x,
        padded_params["w1"], padded_params["w2"],
        padded_params["w3"], padded_params["w4"],
        padded_params["b"],
    )
    # Strip batch / action padding; return f32 for interface parity.
    return out[:B, :action_dim].astype(jnp.float32)


def init_actor_params(key, state_dim, action_dim):
    """f32, unpadded, nn.Linear-style init (uniform +-1/sqrt(fan_in))."""
    dims = [(state_dim, 200), (200, 200), (200, 10), (10, action_dim)]
    params = {}
    for i, (fan_in, fan_out) in enumerate(dims, start=1):
        key, kw, kb = jax.random.split(key, 3)
        bound = 1.0 / float(jnp.sqrt(float(fan_in)))
        params[f"w{i}"] = jax.random.uniform(
            kw, (fan_in, fan_out), jnp.float32, -bound, bound)
        params[f"b{i}"] = jax.random.uniform(
            kb, (1, fan_out), jnp.float32, -bound, bound)
    return params


def pad_actor_params(params, state_dim, action_dim):
    """Pad hidden/action dims to lane multiples; weights -> bf16, biases packed f32.

    The state (K) dim of w1 is NOT padded — the kernel takes the state at its
    real width.  Zero-padded hidden columns + zero biases propagate as exact
    zeros through ReLU and the zero-padded rows of the next weight.
    """
    A_pad = _round_up(max(action_dim, 1), _LANE)

    def pad_w(w, rows, cols):
        buf = jnp.zeros((rows, cols), jnp.bfloat16)
        return buf.at[:w.shape[0], :w.shape[1]].set(w.astype(jnp.bfloat16))

    def pad_b(b, cols):
        buf = jnp.zeros((1, cols), jnp.float32)
        return buf.at[:, :b.shape[1]].set(b.astype(jnp.float32))

    padded = {
        "w1": pad_w(params["w1"], state_dim, _HIDDEN1),
        "w2": pad_w(params["w2"], _HIDDEN1, _HIDDEN1),
        "w3": pad_w(params["w3"], _HIDDEN1, _HIDDEN2),
        "w4": pad_w(params["w4"], _HIDDEN2, A_pad),
        # Packed biases: [b1(256) | b2(256) | b3(128) | b4(A_pad)]
        "b": jnp.concatenate(
            [pad_b(params["b1"], _HIDDEN1), pad_b(params["b2"], _HIDDEN1),
             pad_b(params["b3"], _HIDDEN2), pad_b(params["b4"], A_pad)],
            axis=1),
    }
    return padded


def actor_reference(state, params, max_action):
    a = jnp.maximum(state @ params["w1"] + params["b1"], 0.0)
    a = jnp.maximum(a @ params["w2"] + params["b2"], 0.0)
    a = jnp.maximum(a @ params["w3"] + params["b3"], 0.0)
    return max_action * jnp.tanh(a @ params["w4"] + params["b4"])


if __name__ == "__main__":
    key = jax.random.PRNGKey(0)
    batch, state_dim, action_dim = 2, 16, 4
    max_action = 2.0

    key, kx = jax.random.split(key)
    state = jax.random.normal(kx, (batch, state_dim), jnp.float32)
    params = init_actor_params(key, state_dim, action_dim)
    padded = pad_actor_params(params, state_dim, action_dim)

    out = actor_forward(state, padded, max_action, action_dim)
    out = jax.block_until_ready(out)

    ref = actor_reference(state, params, max_action)
    assert out.shape == (batch, action_dim)
    # bf16 MXU inputs / bf16 output (f32 accumulation) -> loosened tolerance.
    assert jnp.allclose(out, ref, atol=5e-2, rtol=5e-2), "mismatch vs reference"

    print("KERNEL_OK")
</pallas_src>

<mosaic_0001>
module attributes {stable_mosaic.version = 11 : i64} {
  func.func @_actor_kernel(%arg0: i32, %arg1: memref<8x16xf32, #tpu.memory_space<vmem>>, %arg2: memref<16x256xbf16, #tpu.memory_space<vmem>>, %arg3: memref<256x256xbf16, #tpu.memory_space<vmem>>, %arg4: memref<256x128xbf16, #tpu.memory_space<vmem>>, %arg5: memref<128x128xbf16, #tpu.memory_space<vmem>>, %arg6: memref<1x768xf32, #tpu.memory_space<vmem>>, %arg7: memref<8x128xbf16, #tpu.memory_space<vmem>>) attributes {dimension_semantics = [#tpu.dimension_semantics<parallel>], iteration_bounds = array<i64: 1>, scalar_prefetch = 0 : i64, scratch_operands = 0 : i64, tpu.core_type = #tpu.core_type<tc>, window_params = [{transform_indices = @transform_0, window_bounds = array<i64: 8, 16>}, {pipeline_mode = #tpu.pipeline_mode<synchronous>, transform_indices = @transform_1, window_bounds = array<i64: 16, 256>}, {pipeline_mode = #tpu.pipeline_mode<synchronous>, transform_indices = @transform_2, window_bounds = array<i64: 256, 256>}, {pipeline_mode = #tpu.pipeline_mode<synchronous>, transform_indices = @transform_3, window_bounds = array<i64: 256, 128>}, {pipeline_mode = #tpu.pipeline_mode<synchronous>, transform_indices = @transform_4, window_bounds = array<i64: 128, 128>}, {pipeline_mode = #tpu.pipeline_mode<synchronous>, transform_indices = @transform_5, window_bounds = array<i64: 1, 768>}, {transform_indices = @transform_6, window_bounds = array<i64: 8, 128>}]} {
    %c0 = arith.constant 0 : index
    %c0_0 = arith.constant 0 : index
    %0 = vector.load %arg6[%c0, %c0_0] : memref<1x768xf32, #tpu.memory_space<vmem>>, vector<1x256xf32>
    %c0_1 = arith.constant 0 : index
    %c256 = arith.constant 256 : index
    %1 = vector.load %arg6[%c0_1, %c256] : memref<1x768xf32, #tpu.memory_space<vmem>>, vector<1x256xf32>
    %c0_2 = arith.constant 0 : index
    %c512 = arith.constant 512 : index
    %2 = vector.load %arg6[%c0_2, %c512] : memref<1x768xf32, #tpu.memory_space<vmem>>, vector<1x128xf32>
    %c0_3 = arith.constant 0 : index
    %c640 = arith.constant 640 : index
    %3 = vector.load %arg6[%c0_3, %c640] : memref<1x768xf32, #tpu.memory_space<vmem>>, vector<1x128xf32>
    %c0_4 = arith.constant 0 : index
    %c0_5 = arith.constant 0 : index
    %4 = vector.load %arg1[%c0_4, %c0_5] : memref<8x16xf32, #tpu.memory_space<vmem>>, vector<8x16xf32>
    %5 = arith.truncf %4 : vector<8x16xf32> to vector<8x16xbf16>
    %c0_6 = arith.constant 0 : index
    %c0_7 = arith.constant 0 : index
    %6 = vector.load %arg2[%c0_6, %c0_7] : memref<16x256xbf16, #tpu.memory_space<vmem>>, vector<16x256xbf16>
    %cst = arith.constant dense<0.000000e+00> : vector<8x256xf32>
    %7 = tpu.matmul %5, %6, %cst {dimension_numbers = #tpu.dot_dimension_numbers<[1], [0], [0], [1], [0, 0, 1, 1], [], []>} : vector<8x16xbf16>, vector<16x256xbf16>, vector<8x256xf32> -> vector<8x256xf32>
    %8 = vector.broadcast %0 : vector<1x256xf32> to vector<8x256xf32>
    %9 = arith.addf %7, %8 : vector<8x256xf32>
    %cst_8 = arith.constant 0.000000e+00 : f32
    %10 = vector.broadcast %cst_8 : f32 to vector<8x256xf32>
    %11 = arith.maximumf %9, %10 : vector<8x256xf32>
    %12 = arith.truncf %11 : vector<8x256xf32> to vector<8x256xbf16>
    %c0_9 = arith.constant 0 : index
    %c0_10 = arith.constant 0 : index
    %13 = vector.load %arg3[%c0_9, %c0_10] : memref<256x256xbf16, #tpu.memory_space<vmem>>, vector<256x256xbf16>
    %cst_11 = arith.constant dense<0.000000e+00> : vector<8x256xf32>
    %14 = tpu.matmul %12, %13, %cst_11 {dimension_numbers = #tpu.dot_dimension_numbers<[1], [0], [0], [1], [0, 0, 1, 1], [], []>} : vector<8x256xbf16>, vector<256x256xbf16>, vector<8x256xf32> -> vector<8x256xf32>
    %15 = vector.broadcast %1 : vector<1x256xf32> to vector<8x256xf32>
    %16 = arith.addf %14, %15 : vector<8x256xf32>
    %cst_12 = arith.constant 0.000000e+00 : f32
    %17 = vector.broadcast %cst_12 : f32 to vector<8x256xf32>
    %18 = arith.maximumf %16, %17 : vector<8x256xf32>
    %19 = arith.truncf %18 : vector<8x256xf32> to vector<8x256xbf16>
    %c0_13 = arith.constant 0 : index
    %c0_14 = arith.constant 0 : index
    %20 = vector.load %arg4[%c0_13, %c0_14] : memref<256x128xbf16, #tpu.memory_space<vmem>>, vector<256x128xbf16>
    %cst_15 = arith.constant dense<0.000000e+00> : vector<8x128xf32>
    %21 = tpu.matmul %19, %20, %cst_15 {dimension_numbers = #tpu.dot_dimension_numbers<[1], [0], [0], [1], [0, 0, 1, 1], [], []>} : vector<8x256xbf16>, vector<256x128xbf16>, vector<8x128xf32> -> vector<8x128xf32>
    %22 = vector.broadcast %2 : vector<1x128xf32> to vector<8x128xf32>
    %23 = arith.addf %21, %22 : vector<8x128xf32>
    %cst_16 = arith.constant 0.000000e+00 : f32
    %24 = vector.broadcast %cst_16 : f32 to vector<8x128xf32>
    %25 = arith.maximumf %23, %24 : vector<8x128xf32>
    %26 = arith.truncf %25 : vector<8x128xf32> to vector<8x128xbf16>
    %c0_17 = arith.constant 0 : index
    %c0_18 = arith.constant 0 : index
    %27 = vector.load %arg5[%c0_17, %c0_18] : memref<128x128xbf16, #tpu.memory_space<vmem>>, vector<128x128xbf16>
    %cst_19 = arith.constant dense<0.000000e+00> : vector<8x128xf32>
    %28 = tpu.matmul %26, %27, %cst_19 {dimension_numbers = #tpu.dot_dimension_numbers<[1], [0], [0], [1], [0, 0, 1, 1], [], []>} : vector<8x128xbf16>, vector<128x128xbf16>, vector<8x128xf32> -> vector<8x128xf32>
    %29 = vector.broadcast %3 : vector<1x128xf32> to vector<8x128xf32>
    %30 = arith.addf %28, %29 : vector<8x128xf32>
    %31 = math.tanh %30 : vector<8x128xf32>
    %cst_20 = arith.constant 2.000000e+00 : f32
    %32 = vector.broadcast %cst_20 : f32 to vector<8x128xf32>
    %33 = arith.mulf %32, %31 : vector<8x128xf32>
    %34 = arith.truncf %33 : vector<8x128xf32> to vector<8x128xbf16>
    %c0_21 = arith.constant 0 : index
    %c0_22 = arith.constant 0 : index
    %35 = vector.load %arg7[%c0_21, %c0_22] : memref<8x128xbf16, #tpu.memory_space<vmem>>, vector<8x128xbf16>
    tpu.vector_store %arg7[%c0_21, %c0_22], %34 {strides = array<i32>} : memref<8x128xbf16, #tpu.memory_space<vmem>>, vector<8x128xbf16>,
    return
  }
  func.func @transform_0(%arg0: i32) -> (i32, i32) {
    %c0_i32 = arith.constant 0 : i32
    %c0_i32_0 = arith.constant 0 : i32
    return %arg0, %c0_i32 : i32, i32
  }
  func.func @transform_1(%arg0: i32) -> (i32, i32) {
    %c0_i32 = arith.constant 0 : i32
    %c0_i32_0 = arith.constant 0 : i32
    %c0_i32_1 = arith.constant 0 : i32
    return %c0_i32, %c0_i32_0 : i32, i32
  }
  func.func @transform_2(%arg0: i32) -> (i32, i32) {
    %c0_i32 = arith.constant 0 : i32
    %c0_i32_0 = arith.constant 0 : i32
    %c0_i32_1 = arith.constant 0 : i32
    return %c0_i32, %c0_i32_0 : i32, i32
  }
  func.func @transform_3(%arg0: i32) -> (i32, i32) {
    %c0_i32 = arith.constant 0 : i32
    %c0_i32_0 = arith.constant 0 : i32
    %c0_i32_1 = arith.constant 0 : i32
    return %c0_i32, %c0_i32_0 : i32, i32
  }
  func.func @transform_4(%arg0: i32) -> (i32, i32) {
    %c0_i32 = arith.constant 0 : i32
    %c0_i32_0 = arith.constant 0 : i32
    %c0_i32_1 = arith.constant 0 : i32
    return %c0_i32, %c0_i32_0 : i32, i32
  }
  func.func @transform_5(%arg0: i32) -> (i32, i32) {
    %c0_i32 = arith.constant 0 : i32
    %c0_i32_0 = arith.constant 0 : i32
    %c0_i32_1 = arith.constant 0 : i32
    return %c0_i32, %c0_i32_0 : i32, i32
  }
  func.func @transform_6(%arg0: i32) -> (i32, i32) {
    %c0_i32 = arith.constant 0 : i32
    %c0_i32_0 = arith.constant 0 : i32
    return %arg0, %c0_i32 : i32, i32
  }
}

</mosaic_0001>

<llo_original>
// kernel: tpu_custom_call.1
$region0: #{tpu_custom_call.1}
  #allocation0 [shape = 'u32[]', space=smem, size = 0x4, offset = 0x4, fixed_abs, tag = 'smem constant byte address 0x4 - core index']
  #allocation1 [shape = 'u32[72,128]{1,0:T(1,128)}', space=vmem, size = 0x9000, scoped, tag = 'internal scratch']
  %s0 = inlined_call_operand.hbm [shape: f32[8,16], index: 0, kind: input, shape index: {}]
  %s1 = inlined_call_operand.hbm [shape: bf16[16,256], index: 1, kind: input, shape index: {}]
  %s2 = inlined_call_operand.hbm [shape: bf16[256,256], index: 2, kind: input, shape index: {}]
  %s3 = inlined_call_operand.hbm [shape: bf16[256,128], index: 3, kind: input, shape index: {}]
  %s4 = inlined_call_operand.hbm [shape: bf16[128,128], index: 4, kind: input, shape index: {}]
  %s5 = inlined_call_operand.hbm [shape: f32[1,768], index: 5, kind: input, shape index: {}]
  %s6 = inlined_call_operand.hbm [shape: bf16[8,128], index: 6, kind: output, shape index: {}]
  %s7 = sld [smem:[#allocation0]]
  $region58: #{tpu_custom_call.1} parent=0
    _
  %s9 = ssub.s32 1, %s7
  %s10 = scalar_select 0, %s9, %s7
  $region1: #{tpu_custom_call.1} parent=0
    #allocation2 [shape = 'u8[4096]{0}', space=vmem, size = 0x1000, scoped, tag = 'input window, operand 0, single buffered']
    #allocation3 [shape = 's32[1]{0}', space=sflag, size = 0x4, scoped, tag = 'scoped memory for tpu_custom_call.1']
    #allocation4 [shape = 's32[1]{0}', space=sflag, size = 0x4, scoped, tag = 'scoped memory for tpu_custom_call.1']
    #allocation5 [shape = 'u8[8192]{0}', space=vmem, size = 0x2000, scoped, tag = 'input window, operand 1, single buffered']
    #allocation6 [shape = 's32[1]{0}', space=sflag, size = 0x4, scoped, tag = 'scoped memory for tpu_custom_call.1']
    #allocation7 [shape = 'u8[131072]{0}', space=vmem, size = 0x20000, scoped, tag = 'input window, operand 2, single buffered']
    #allocation8 [shape = 'u8[65536]{0}', space=vmem, size = 0x10000, scoped, tag = 'input window, operand 3, single buffered']
    #allocation9 [shape = 's32[1]{0}', space=sflag, size = 0x4, scoped, tag = 'scoped memory for tpu_custom_call.1']
    #allocation10 [shape = 'u8[32768]{0}', space=vmem, size = 0x8000, scoped, tag = 'input window, operand 4, single buffered']
    #allocation11 [shape = 'u8[3072]{0}', space=vmem, size = 0xc00, scoped, tag = 'input window, operand 5, single buffered']
    #allocation12 [shape = 's32[1]{0}', space=sflag, size = 0x4, scoped, tag = 'scoped memory for tpu_custom_call.1']
    #allocation13 [shape = 'u8[2048]{0}', space=vmem, size = 0x800, scoped, tag = 'output window, operand 0, single buffered']
    %11 = vsyncpa [#allocation3], 0
    %12 = vsyncpa [#allocation6], 0
    %13 = vsyncpa [#allocation9], 0
    %14 = vsyncpa [#allocation12], 0
    %15 = vsyncpa [#allocation4], 0
    // Predicated region
    $region2: #{tpu_custom_call.1} parent=1 // pred_check
      _
    $region3: #{tpu_custom_call.1} parent=1 // pred_check_branch
      %17 = sbr.rel (0) target = $region5
    $region4: #{tpu_custom_call.1} parent=1 // pred_region
      %19 = vsyncadd [#allocation3], 0
      %s21 = sshll.u32 %s0, 4
      %s22 = int_to_ptr.hbm [resolvable:$true] %s21
      %s23 = sshll.u32 [#allocation2], 4
      %s24 = int_to_ptr.vmem [resolvable:$true] %s23
      %26 = dma.hbm_to_vmem [thread:$0]  %s22, 128, %s24, [#allocation3]
    $region5: #{tpu_custom_call.1} parent=1 // pred_fallthru
      _
    // Predicated region
    $region6: #{tpu_custom_call.1} parent=1 // pred_check
      _
    $region7: #{tpu_custom_call.1} parent=1 // pred_check_branch
      %28 = sbr.rel (0) target = $region9
    $region8: #{tpu_custom_call.1} parent=1 // pred_region
      %30 = vsyncadd [#allocation6], 0
      %s31 = sshll.u32 %s1, 4
      %s32 = int_to_ptr.hbm [resolvable:$true] %s31
      %s33 = sshll.u32 [#allocation5], 4
      %s34 = int_to_ptr.vmem [resolvable:$true] %s33
      %39 = dma.hbm_to_vmem [thread:$0]  %s32, 256, %s34, [#allocation6], 128, 128, 8
    $region9: #{tpu_custom_call.1} parent=1 // pred_fallthru
      _
    // Predicated region
    $region10: #{tpu_custom_call.1} parent=1 // pred_check
      _
    $region11: #{tpu_custom_call.1} parent=1 // pred_check_branch
      %41 = sbr.rel (0) target = $region13
    $region12: #{tpu_custom_call.1} parent=1 // pred_region
      %43 = vsyncadd [#allocation6], 0
      %s44 = sshll.u32 %s2, 4
      %s45 = int_to_ptr.hbm [resolvable:$true] %s44
      %s46 = sshll.u32 [#allocation7], 4
      %s47 = int_to_ptr.vmem [resolvable:$true] %s46
      %52 = dma.hbm_to_vmem [thread:$0]  %s45, 4096, %s47, [#allocation6], 128, 128, 8
    $region13: #{tpu_custom_call.1} parent=1 // pred_fallthru
      _
    // Predicated region
    $region14: #{tpu_custom_call.1} parent=1 // pred_check
      _
    $region15: #{tpu_custom_call.1} parent=1 // pred_check_branch
      %54 = sbr.rel (0) target = $region17
    $region16: #{tpu_custom_call.1} parent=1 // pred_region
      %56 = vsyncadd [#allocation9], 0
      %s57 = sshll.u32 %s3, 4
      %s58 = int_to_ptr.hbm [resolvable:$true] %s57
      %s59 = sshll.u32 [#allocation8], 4
      %s60 = int_to_ptr.vmem [resolvable:$true] %s59
      %65 = dma.hbm_to_vmem [thread:$0]  %s58, 2048, %s60, [#allocation9], 64, 64, 4
    $region17: #{tpu_custom_call.1} parent=1 // pred_fallthru
      _
    // Predicated region
    $region18: #{tpu_custom_call.1} parent=1 // pred_check
      _
    $region19: #{tpu_custom_call.1} parent=1 // pred_check_branch
      %67 = sbr.rel (0) target = $region21
    $region20: #{tpu_custom_call.1} parent=1 // pred_region
      %69 = vsyncadd [#allocation9], 0
      %s70 = sshll.u32 %s4, 4
      %s71 = int_to_ptr.hbm [resolvable:$true] %s70
      %s72 = sshll.u32 [#allocation10], 4
      %s73 = int_to_ptr.vmem [resolvable:$true] %s72
      %78 = dma.hbm_to_vmem [thread:$0]  %s71, 1024, %s73, [#allocation9], 64, 64, 4
    $region21: #{tpu_custom_call.1} parent=1 // pred_fallthru
      _
    // Predicated region
    $region22: #{tpu_custom_call.1} parent=1 // pred_check
      _
    $region23: #{tpu_custom_call.1} parent=1 // pred_check_branch
      %80 = sbr.rel (0) target = $region25
    $region24: #{tpu_custom_call.1} parent=1 // pred_region
      %82 = vsyncadd [#allocation12], 0
      %s84 = sshll.u32 %s5, 4
      %s85 = int_to_ptr.hbm [resolvable:$true] %s84
      %s86 = sshll.u32 [#allocation11], 4
      %s87 = int_to_ptr.vmem [resolvable:$true] %s86
      %89 = dma.hbm_to_vmem [thread:$0]  %s85, 96, %s87, [#allocation12]
    $region25: #{tpu_custom_call.1} parent=1 // pred_fallthru
      _
    // Predicated region
    $region26: #{tpu_custom_call.1} parent=1 // pred_check
      _
    $region27: #{tpu_custom_call.1} parent=1 // pred_check_branch
      %91 = sbr.rel (0) target = $region29
    $region28: #{tpu_custom_call.1} parent=1 // pred_region
      %93 = dma.done [#allocation3], 128
    $region29: #{tpu_custom_call.1} parent=1 // pred_fallthru
      _
    // Predicated region
    $region30: #{tpu_custom_call.1} parent=1 // pred_check
      _
    $region31: #{tpu_custom_call.1} parent=1 // pred_check_branch
      %95 = sbr.rel (0) target = $region33
    $region32: #{tpu_custom_call.1} parent=1 // pred_region
      %97 = dma.done [#allocation6], 256
    $region33: #{tpu_custom_call.1} parent=1 // pred_fallthru
      _
    // Predicated region
    $region34: #{tpu_custom_call.1} parent=1 // pred_check
      _
    $region35: #{tpu_custom_call.1} parent=1 // pred_check_branch
      %99 = sbr.rel (0) target = $region37
    $region36: #{tpu_custom_call.1} parent=1 // pred_region
      %101 = dma.done [#allocation6], 4096
    $region37: #{tpu_custom_call.1} parent=1 // pred_fallthru
      _
    // Predicated region
    $region38: #{tpu_custom_call.1} parent=1 // pred_check
      _
    $region39: #{tpu_custom_call.1} parent=1 // pred_check_branch
      %103 = sbr.rel (0) target = $region41
    $region40: #{tpu_custom_call.1} parent=1 // pred_region
      %105 = dma.done [#allocation9], 2048
    $region41: #{tpu_custom_call.1} parent=1 // pred_fallthru
      _
    // Predicated region
    $region42: #{tpu_custom_call.1} parent=1 // pred_check
      _
    $region43: #{tpu_custom_call.1} parent=1 // pred_check_branch
      %107 = sbr.rel (0) target = $region45
    $region44: #{tpu_custom_call.1} parent=1 // pred_region
      %109 = dma.done [#allocation9], 1024
    $region45: #{tpu_custom_call.1} parent=1 // pred_fallthru
      _
    // Predicated region
    $region46: #{tpu_custom_call.1} parent=1 // pred_check
      _
    $region47: #{tpu_custom_call.1} parent=1 // pred_check_branch
      %111 = sbr.rel (0) target = $region49
    $region48: #{tpu_custom_call.1} parent=1 // pred_region
      %113 = dma.done [#allocation12], 96
    $region49: #{tpu_custom_call.1} parent=1 // pred_fallthru
      _
    %v115 = vld [vmem:[#allocation11] sm:$0x3]
    %v116 = vld [vmem:[#allocation11 + $0x2] sm:$0x3]
    %v117 = vld [vmem:[#allocation11 + $0x4] sm:$0x1]
    %v118 = vld [vmem:[#allocation11 + $0x5] sm:$0x1]
    %v119 = vld [vmem:[#allocation2] sm:$0xff]
    %v120 = vpack.c.bf16 %v119, %v119
    %v121 = vld [vmem:[#allocation5] sm:$0xff]
    %v122 = vld [vmem:[#allocation5 + $0x8] sm:$0xff]
    %v124 = vperm.slane %v115, 0
    %v125 = vperm.slane %v115, 1
    %v130 = vunpack.c.l.b16 %v121
    %v131 = vunpack.c.h.b16 %v121
    %v132 = vunpack.c.l.b16 %v122
    %v133 = vunpack.c.h.b16 %v122
    %v134 = vpack.c.b16 %v132, %v130
    %v135 = vpack.c.b16 %v133, %v131
    %vm138 = vcmask 130048
    %v140 = vsel %vm138, %v120, 0
    %142 = vmatpush.bf16.msra.mxu0 0
    %143 = vmatpush.bf16.msra.mxu0 0
    %144 = vmatpush.bf16.msra.mxu0 0
    %145 = vmatpush.bf16.msra.mxu0 0
    %146 = vmatpush.bf16.msra.mxu0 0
    %147 = vmatpush.bf16.msra.mxu0 0
    %148 = vmatpush.bf16.msra.mxu0 0
    %149 = vmatpush.bf16.msra.mxu0 %v134
    %150 = vmatmul.bf16.gmra.mxu0 %v140
    %v151 = vpop.f32.mrf.mxu0
    %v152 = vadd.f32 %v124, %v151
    %v153 = vpop.f32.mrf.mxu0
    %154 = vdwg.mxu0
    %155 = vmatpush.bf16.msra.mxu0 0
    %156 = vmatpush.bf16.msra.mxu0 0
    %157 = vmatpush.bf16.msra.mxu0 0
    %158 = vmatpush.bf16.msra.mxu0 0
    %159 = vmatpush.bf16.msra.mxu0 0
    %160 = vmatpush.bf16.msra.mxu0 0
    %161 = vmatpush.bf16.msra.mxu0 0
    %162 = vmatpush.bf16.msra.mxu0 %v135
    %163 = vmatmul.bf16.gmra.mxu0 %v140
    %v164 = vpop.f32.mrf.mxu0
    %v165 = vadd.f32 %v125, %v164
    %v166 = vpop.f32.mrf.mxu0
    %167 = vdwg.mxu0
    %v168 = vmax.f32 %v152, 0.0
    %v169 = vmax.f32 %v165, 0.0
    %v170 = vpack.c.bf16 %v168, %v168
    %v171 = vpack.c.bf16 %v169, %v169
    %v172 = vld [vmem:[#allocation7] sm:$0xff]
    %v173 = vld [vmem:[#allocation7 + $0x8] sm:$0xff]
    %v174 = vld [vmem:[#allocation7 + $0x10] sm:$0xff]
    %v175 = vld [vmem:[#allocation7 + $0x18] sm:$0xff]
    %v176 = vld [vmem:[#allocation7 + $0x20] sm:$0xff]
    %v177 = vld [vmem:[#allocation7 + $0x28] sm:$0xff]
    %v178 = vld [vmem:[#allocation7 + $0x30] sm:$0xff]
    %v179 = vld [vmem:[#allocation7 + $0x38] sm:$0xff]
    %v180 = vld [vmem:[#allocation7 + $0x40] sm:$0xff]
    %v181 = vld [vmem:[#allocation7 + $0x48] sm:$0xff]
    %v182 = vld [vmem:[#allocation7 + $0x50] sm:$0xff]
    %v183 = vld [vmem:[#allocation7 + $0x58] sm:$0xff]
    %v184 = vld [vmem:[#allocation7 + $0x60] sm:$0xff]
    %v185 = vld [vmem:[#allocation7 + $0x68] sm:$0xff]
    %v186 = vld [vmem:[#allocation7 + $0x70] sm:$0xff]
    %v187 = vld [vmem:[#allocation7 + $0x78] sm:$0xff]
    %v188 = vld [vmem:[#allocation7 + $0x80] sm:$0xff]
    %v189 = vld [vmem:[#allocation7 + $0x88] sm:$0xff]
    %v190 = vld [vmem:[#allocation7 + $0x90] sm:$0xff]
    %v191 = vld [vmem:[#allocation7 + $0x98] sm:$0xff]
    %v192 = vld [vmem:[#allocation7 + $0xa0] sm:$0xff]
    %v193 = vld [vmem:[#allocation7 + $0xa8] sm:$0xff]
    %v194 = vld [vmem:[#allocation7 + $0xb0] sm:$0xff]
    %v195 = vld [vmem:[#allocation7 + $0xb8] sm:$0xff]
    %v196 = vld [vmem:[#allocation7 + $0xc0] sm:$0xff]
    %v197 = vld [vmem:[#allocation7 + $0xc8] sm:$0xff]
    %v198 = vld [vmem:[#allocation7 + $0xd0] sm:$0xff]
    %v199 = vld [vmem:[#allocation7 + $0xd8] sm:$0xff]
    %v200 = vld [vmem:[#allocation7 + $0xe0] sm:$0xff]
    %v201 = vld [vmem:[#allocation7 + $0xe8] sm:$0xff]
    %v202 = vld [vmem:[#allocation7 + $0xf0] sm:$0xff]
    %v203 = vld [vmem:[#allocation7 + $0xf8] sm:$0xff]
    %v205 = vperm.slane %v116, 0
    %v206 = vperm.slane %v116, 1
    %v241 = vunpack.c.l.b16 %v172
    %v242 = vunpack.c.h.b16 %v172
    %v243 = vunpack.c.l.b16 %v173
    %v244 = vunpack.c.h.b16 %v173
    %v245 = vunpack.c.l.b16 %v174
    %v246 = vunpack.c.h.b16 %v174
    %v247 = vunpack.c.l.b16 %v175
    %v248 = vunpack.c.h.b16 %v175
    %v249 = vunpack.c.l.b16 %v176
    %v250 = vunpack.c.h.b16 %v176
    %v251 = vunpack.c.l.b16 %v177
    %v252 = vunpack.c.h.b16 %v177
    %v253 = vunpack.c.l.b16 %v178
    %v254 = vunpack.c.h.b16 %v178
    %v255 = vunpack.c.l.b16 %v179
    %v256 = vunpack.c.h.b16 %v179
    %v257 = vunpack.c.l.b16 %v180
    %v258 = vunpack.c.h.b16 %v180
    %v259 = vunpack.c.l.b16 %v181
    %v260 = vunpack.c.h.b16 %v181
    %v261 = vunpack.c.l.b16 %v182
    %v262 = vunpack.c.h.b16 %v182
    %v263 = vunpack.c.l.b16 %v183
    %v264 = vunpack.c.h.b16 %v183
    %v265 = vunpack.c.l.b16 %v184
    %v266 = vunpack.c.h.b16 %v184
    %v267 = vunpack.c.l.b16 %v185
    %v268 = vunpack.c.h.b16 %v185
    %v269 = vunpack.c.l.b16 %v186
    %v270 = vunpack.c.h.b16 %v186
    %v271 = vunpack.c.l.b16 %v187
    %v272 = vunpack.c.h.b16 %v187
    %v273 = vunpack.c.l.b16 %v188
    %v274 = vunpack.c.h.b16 %v188
    %v275 = vunpack.c.l.b16 %v189
    %v276 = vunpack.c.h.b16 %v189
    %v277 = vunpack.c.l.b16 %v190
    %v278 = vunpack.c.h.b16 %v190
    %v279 = vunpack.c.l.b16 %v191
    %v280 = vunpack.c.h.b16 %v191
    %v281 = vunpack.c.l.b16 %v192
    %v282 = vunpack.c.h.b16 %v192
    %v283 = vunpack.c.l.b16 %v193
    %v284 = vunpack.c.h.b16 %v193
    %v285 = vunpack.c.l.b16 %v194
    %v286 = vunpack.c.h.b16 %v194
    %v287 = vunpack.c.l.b16 %v195
    %v288 = vunpack.c.h.b16 %v195
    %v289 = vunpack.c.l.b16 %v196
    %v290 = vunpack.c.h.b16 %v196
    %v291 = vunpack.c.l.b16 %v197
    %v292 = vunpack.c.h.b16 %v197
    %v293 = vunpack.c.l.b16 %v198
    %v294 = vunpack.c.h.b16 %v198
    %v295 = vunpack.c.l.b16 %v199
    %v296 = vunpack.c.h.b16 %v199
    %v297 = vunpack.c.l.b16 %v200
    %v298 = vunpack.c.h.b16 %v200
    %v299 = vunpack.c.l.b16 %v201
    %v300 = vunpack.c.h.b16 %v201
    %v301 = vunpack.c.l.b16 %v202
    %v302 = vunpack.c.h.b16 %v202
    %v303 = vunpack.c.l.b16 %v203
    %v304 = vunpack.c.h.b16 %v203
    %v305 = vpack.c.b16 %v243, %v241
    %v306 = vpack.c.b16 %v244, %v242
    %v307 = vpack.c.b16 %v247, %v245
    %v308 = vpack.c.b16 %v248, %v246
    %v309 = vpack.c.b16 %v251, %v249
    %v310 = vpack.c.b16 %v252, %v250
    %v311 = vpack.c.b16 %v255, %v253
    %v312 = vpack.c.b16 %v256, %v254
    %v313 = vpack.c.b16 %v259, %v257
    %v314 = vpack.c.b16 %v260, %v258
    %v315 = vpack.c.b16 %v263, %v261
    %v316 = vpack.c.b16 %v264, %v262
    %v317 = vpack.c.b16 %v267, %v265
    %v318 = vpack.c.b16 %v268, %v266
    %v319 = vpack.c.b16 %v271, %v269
    %v320 = vpack.c.b16 %v272, %v270
    %v321 = vpack.c.b16 %v275, %v273
    %v322 = vpack.c.b16 %v276, %v274
    %v323 = vpack.c.b16 %v279, %v277
    %v324 = vpack.c.b16 %v280, %v278
    %v325 = vpack.c.b16 %v283, %v281
    %v326 = vpack.c.b16 %v284, %v282
    %v327 = vpack.c.b16 %v287, %v285
    %v328 = vpack.c.b16 %v288, %v286
    %v329 = vpack.c.b16 %v291, %v289
    %v330 = vpack.c.b16 %v292, %v290
    %v331 = vpack.c.b16 %v295, %v293
    %v332 = vpack.c.b16 %v296, %v294
    %v333 = vpack.c.b16 %v299, %v297
    %v334 = vpack.c.b16 %v300, %v298
    %v335 = vpack.c.b16 %v303, %v301
    %v336 = vpack.c.b16 %v304, %v302
    %369 = vmatpush.bf16.msra.mxu0 %v319
    %370 = vmatpush.bf16.msra.mxu0 %v317
    %371 = vmatpush.bf16.msra.mxu0 %v315
    %372 = vmatpush.bf16.msra.mxu0 %v313
    %373 = vmatpush.bf16.msra.mxu0 %v311
    %374 = vmatpush.bf16.msra.mxu0 %v309
    %375 = vmatpush.bf16.msra.mxu0 %v307
    %376 = vmatpush.bf16.msra.mxu0 %v305
    %377 = vmatmul.bf16.gmra.mxu0 %v170
    %v378 = vpop.f32.mrf.mxu0
    %v379 = vadd.f32 %v205, %v378
    %v380 = vpop.f32.mrf.mxu0
    %381 = vdwg.mxu0
    %382 = vmatpush.bf16.msra.mxu0 %v335
    %383 = vmatpush.bf16.msra.mxu0 %v333
    %384 = vmatpush.bf16.msra.mxu0 %v331
    %385 = vmatpush.bf16.msra.mxu0 %v329
    %386 = vmatpush.bf16.msra.mxu0 %v327
    %387 = vmatpush.bf16.msra.mxu0 %v325
    %388 = vmatpush.bf16.msra.mxu0 %v323
    %389 = vmatpush.bf16.msra.mxu0 %v321
    %390 = vmatmul.bf16.gmra.mxu0 %v171
    %v391 = vpop.f32.mrf.mxu0
    %v392 = vadd.f32 %v379, %v391
    %v393 = vpop.f32.mrf.mxu0
    %394 = vdwg.mxu0
    %395 = vmatpush.bf16.msra.mxu0 %v320
    %396 = vmatpush.bf16.msra.mxu0 %v318
    %397 = vmatpush.bf16.msra.mxu0 %v316
    %398 = vmatpush.bf16.msra.mxu0 %v314
    %399 = vmatpush.bf16.msra.mxu0 %v312
    %400 = vmatpush.bf16.msra.mxu0 %v310
    %401 = vmatpush.bf16.msra.mxu0 %v308
    %402 = vmatpush.bf16.msra.mxu0 %v306
    %403 = vmatmul.bf16.gmra.mxu0 %v170
    %v404 = vpop.f32.mrf.mxu0
    %v405 = vadd.f32 %v206, %v404
    %v406 = vpop.f32.mrf.mxu0
    %407 = vdwg.mxu0
    %408 = vmatpush.bf16.msra.mxu0 %v336
    %409 = vmatpush.bf16.msra.mxu0 %v334
    %410 = vmatpush.bf16.msra.mxu0 %v332
    %411 = vmatpush.bf16.msra.mxu0 %v330
    %412 = vmatpush.bf16.msra.mxu0 %v328
    %413 = vmatpush.bf16.msra.mxu0 %v326
    %414 = vmatpush.bf16.msra.mxu0 %v324
    %415 = vmatpush.bf16.msra.mxu0 %v322
    %416 = vmatmul.bf16.gmra.mxu0 %v171
    %v417 = vpop.f32.mrf.mxu0
    %v418 = vadd.f32 %v405, %v417
    %v419 = vpop.f32.mrf.mxu0
    %420 = vdwg.mxu0
    %v421 = vmax.f32 %v392, 0.0
    %v422 = vmax.f32 %v418, 0.0
    %v423 = vpack.c.bf16 %v421, %v421
    %v424 = vpack.c.bf16 %v422, %v422
    %v425 = vld [vmem:[#allocation8] sm:$0xf]
    %v426 = vld [vmem:[#allocation8 + $0x4] sm:$0xf]
    %v427 = vld [vmem:[#allocation8 + $0x8] sm:$0xf]
    %v428 = vld [vmem:[#allocation8 + $0xc] sm:$0xf]
    %v429 = vld [vmem:[#allocation8 + $0x10] sm:$0xf]
    %v430 = vld [vmem:[#allocation8 + $0x14] sm:$0xf]
    %v431 = vld [vmem:[#allocation8 + $0x18] sm:$0xf]
    %v432 = vld [vmem:[#allocation8 + $0x1c] sm:$0xf]
    %v433 = vld [vmem:[#allocation8 + $0x20] sm:$0xf]
    %v434 = vld [vmem:[#allocation8 + $0x24] sm:$0xf]
    %v435 = vld [vmem:[#allocation8 + $0x28] sm:$0xf]
    %v436 = vld [vmem:[#allocation8 + $0x2c] sm:$0xf]
    %v437 = vld [vmem:[#allocation8 + $0x30] sm:$0xf]
    %v438 = vld [vmem:[#allocation8 + $0x34] sm:$0xf]
    %v439 = vld [vmem:[#allocation8 + $0x38] sm:$0xf]
    %v440 = vld [vmem:[#allocation8 + $0x3c] sm:$0xf]
    %v441 = vld [vmem:[#allocation8 + $0x40] sm:$0xf]
    %v442 = vld [vmem:[#allocation8 + $0x44] sm:$0xf]
    %v443 = vld [vmem:[#allocation8 + $0x48] sm:$0xf]
    %v444 = vld [vmem:[#allocation8 + $0x4c] sm:$0xf]
    %v445 = vld [vmem:[#allocation8 + $0x50] sm:$0xf]
    %v446 = vld [vmem:[#allocation8 + $0x54] sm:$0xf]
    %v447 = vld [vmem:[#allocation8 + $0x58] sm:$0xf]
    %v448 = vld [vmem:[#allocation8 + $0x5c] sm:$0xf]
    %v449 = vld [vmem:[#allocation8 + $0x60] sm:$0xf]
    %v450 = vld [vmem:[#allocation8 + $0x64] sm:$0xf]
    %v451 = vld [vmem:[#allocation8 + $0x68] sm:$0xf]
    %v452 = vld [vmem:[#allocation8 + $0x6c] sm:$0xf]
    %v453 = vld [vmem:[#allocation8 + $0x70] sm:$0xf]
    %v454 = vld [vmem:[#allocation8 + $0x74] sm:$0xf]
    %v455 = vld [vmem:[#allocation8 + $0x78] sm:$0xf]
    %v456 = vld [vmem:[#allocation8 + $0x7c] sm:$0xf]
    %v458 = vperm.slane %v117, 0
    %v492 = vunpack.c.l.b16 %v425
    %v493 = vunpack.c.l.b16 %v426
    %v494 = vunpack.c.l.b16 %v427
    %v495 = vunpack.c.l.b16 %v428
    %v496 = vunpack.c.l.b16 %v429
    %v497 = vunpack.c.l.b16 %v430
    %v498 = vunpack.c.l.b16 %v431
    %v499 = vunpack.c.l.b16 %v432
    %v500 = vunpack.c.l.b16 %v433
    %v501 = vunpack.c.l.b16 %v434
    %v502 = vunpack.c.l.b16 %v435
    %v503 = vunpack.c.l.b16 %v436
    %v504 = vunpack.c.l.b16 %v437
    %v505 = vunpack.c.l.b16 %v438
    %v506 = vunpack.c.l.b16 %v439
    %v507 = vunpack.c.l.b16 %v440
    %v508 = vunpack.c.l.b16 %v441
    %v509 = vunpack.c.l.b16 %v442
    %v510 = vunpack.c.l.b16 %v443
    %v511 = vunpack.c.l.b16 %v444
    %v512 = vunpack.c.l.b16 %v445
    %v513 = vunpack.c.l.b16 %v446
    %v514 = vunpack.c.l.b16 %v447
    %v515 = vunpack.c.l.b16 %v448
    %v516 = vunpack.c.l.b16 %v449
    %v517 = vunpack.c.l.b16 %v450
    %v518 = vunpack.c.l.b16 %v451
    %v519 = vunpack.c.l.b16 %v452
    %v520 = vunpack.c.l.b16 %v453
    %v521 = vunpack.c.l.b16 %v454
    %v522 = vunpack.c.l.b16 %v455
    %v523 = vunpack.c.l.b16 %v456
    %v524 = vpack.c.b16 %v493, %v492
    %v525 = vpack.c.b16 %v495, %v494
    %v526 = vpack.c.b16 %v497, %v496
    %v527 = vpack.c.b16 %v499, %v498
    %v528 = vpack.c.b16 %v501, %v500
    %v529 = vpack.c.b16 %v503, %v502
    %v530 = vpack.c.b16 %v505, %v504
    %v531 = vpack.c.b16 %v507, %v506
    %v532 = vpack.c.b16 %v509, %v508
    %v533 = vpack.c.b16 %v511, %v510
    %v534 = vpack.c.b16 %v513, %v512
    %v535 = vpack.c.b16 %v515, %v514
    %v536 = vpack.c.b16 %v517, %v516
    %v537 = vpack.c.b16 %v519, %v518
    %v538 = vpack.c.b16 %v521, %v520
    %v539 = vpack.c.b16 %v523, %v522
    %556 = vmatpush.bf16.msra.mxu0 %v531
    %557 = vmatpush.bf16.msra.mxu0 %v530
    %558 = vmatpush.bf16.msra.mxu0 %v529
    %559 = vmatpush.bf16.msra.mxu0 %v528
    %560 = vmatpush.bf16.msra.mxu0 %v527
    %561 = vmatpush.bf16.msra.mxu0 %v526
    %562 = vmatpush.bf16.msra.mxu0 %v525
    %563 = vmatpush.bf16.msra.mxu0 %v524
    %564 = vmatmul.bf16.gmra.mxu0 %v423
    %v565 = vpop.f32.mrf.mxu0
    %v566 = vadd.f32 %v458, %v565
    %v567 = vpop.f32.mrf.mxu0
    %568 = vdwg.mxu0
    %569 = vmatpush.bf16.msra.mxu0 %v539
    %570 = vmatpush.bf16.msra.mxu0 %v538
    %571 = vmatpush.bf16.msra.mxu0 %v537
    %572 = vmatpush.bf16.msra.mxu0 %v536
    %573 = vmatpush.bf16.msra.mxu0 %v535
    %574 = vmatpush.bf16.msra.mxu0 %v534
    %575 = vmatpush.bf16.msra.mxu0 %v533
    %576 = vmatpush.bf16.msra.mxu0 %v532
    %577 = vmatmul.bf16.gmra.mxu0 %v424
    %v578 = vpop.f32.mrf.mxu0
    %v579 = vadd.f32 %v566, %v578
    %v580 = vpop.f32.mrf.mxu0
    %581 = vdwg.mxu0
    %v582 = vmax.f32 %v579, 0.0
    %v583 = vpack.c.bf16 %v582, %v582
    %v584 = vld [vmem:[#allocation10] sm:$0xf]
    %v585 = vld [vmem:[#allocation10 + $0x4] sm:$0xf]
    %v586 = vld [vmem:[#allocation10 + $0x8] sm:$0xf]
    %v587 = vld [vmem:[#allocation10 + $0xc] sm:$0xf]
    %v588 = vld [vmem:[#allocation10 + $0x10] sm:$0xf]
    %v589 = vld [vmem:[#allocation10 + $0x14] sm:$0xf]
    %v590 = vld [vmem:[#allocation10 + $0x18] sm:$0xf]
    %v591 = vld [vmem:[#allocation10 + $0x1c] sm:$0xf]
    %v592 = vld [vmem:[#allocation10 + $0x20] sm:$0xf]
    %v593 = vld [vmem:[#allocation10 + $0x24] sm:$0xf]
    %v594 = vld [vmem:[#allocation10 + $0x28] sm:$0xf]
    %v595 = vld [vmem:[#allocation10 + $0x2c] sm:$0xf]
    %v596 = vld [vmem:[#allocation10 + $0x30] sm:$0xf]
    %v597 = vld [vmem:[#allocation10 + $0x34] sm:$0xf]
    %v598 = vld [vmem:[#allocation10 + $0x38] sm:$0xf]
    %v599 = vld [vmem:[#allocation10 + $0x3c] sm:$0xf]
    %v601 = vperm.slane %v118, 0
    %v619 = vunpack.c.l.b16 %v584
    %v620 = vunpack.c.l.b16 %v585
    %v621 = vunpack.c.l.b16 %v586
    %v622 = vunpack.c.l.b16 %v587
    %v623 = vunpack.c.l.b16 %v588
    %v624 = vunpack.c.l.b16 %v589
    %v625 = vunpack.c.l.b16 %v590
    %v626 = vunpack.c.l.b16 %v591
    %v627 = vunpack.c.l.b16 %v592
    %v628 = vunpack.c.l.b16 %v593
    %v629 = vunpack.c.l.b16 %v594
    %v630 = vunpack.c.l.b16 %v595
    %v631 = vunpack.c.l.b16 %v596
    %v632 = vunpack.c.l.b16 %v597
    %v633 = vunpack.c.l.b16 %v598
    %v634 = vunpack.c.l.b16 %v599
    %v635 = vpack.c.b16 %v620, %v619
    %v636 = vpack.c.b16 %v622, %v621
    %v637 = vpack.c.b16 %v624, %v623
    %v638 = vpack.c.b16 %v626, %v625
    %v639 = vpack.c.b16 %v628, %v627
    %v640 = vpack.c.b16 %v630, %v629
    %v641 = vpack.c.b16 %v632, %v631
    %v642 = vpack.c.b16 %v634, %v633
    %651 = vmatpush.bf16.msra.mxu0 %v642
    %652 = vmatpush.bf16.msra.mxu0 %v641
    %653 = vmatpush.bf16.msra.mxu0 %v640
    %654 = vmatpush.bf16.msra.mxu0 %v639
    %655 = vmatpush.bf16.msra.mxu0 %v638
    %656 = vmatpush.bf16.msra.mxu0 %v637
    %657 = vmatpush.bf16.msra.mxu0 %v636
    %658 = vmatpush.bf16.msra.mxu0 %v635
    %659 = vmatmul.bf16.gmra.mxu0 %v583
    %v660 = vpop.f32.mrf.mxu0
    %v661 = vadd.f32 %v601, %v660
    %v662 = vpop.f32.mrf.mxu0
    %663 = vdwg.mxu0
    %v664 = vtanh.pop %v661
    %v665 = vmul.f32 %v664, 2.0
    %v666 = vpack.c.bf16 %v665, %v665
    %667 = vst [vmem:[#allocation13] sm:$0xf] %v666
    // Predicated region
    $region50: #{tpu_custom_call.1} parent=1 // pred_check
      _
    $region51: #{tpu_custom_call.1} parent=1 // pred_check_branch
      %669 = sbr.rel (0) target = $region53
    $region52: #{tpu_custom_call.1} parent=1 // pred_region
      %671 = vsyncadd [#allocation4], 0
      %s673 = sshll.u32 [#allocation13], 4
      %s674 = int_to_ptr.vmem [resolvable:$true] %s673
      %s675 = sshll.u32 %s6, 4
      %s676 = int_to_ptr.hbm [resolvable:$true] %s675
      %678 = dma.vmem_to_hbm [thread:$0]  %s674, 64, %s676, [#allocation4]
    $region53: #{tpu_custom_call.1} parent=1 // pred_fallthru
      _
    // Predicated region
    $region54: #{tpu_custom_call.1} parent=1 // pred_check
      _
    $region55: #{tpu_custom_call.1} parent=1 // pred_check_branch
      %680 = sbr.rel (0) target = $region57
    $region56: #{tpu_custom_call.1} parent=1 // pred_region
      %682 = dma.done [#allocation4], 64
    $region57: #{tpu_custom_call.1} parent=1 // pred_fallthru
      _
    %683 = vsyncpa [#allocation3], 1
    %684 = vsyncpa [#allocation6], 1
    %685 = vsyncpa [#allocation9], 1
    %686 = vsyncpa [#allocation12], 1
    %687 = vsyncpa [#allocation4], 1

</llo_original>
